<compile_context>
chip_gen: v6e
topology: v6e:2x2x1
jax: 0.10.0
libtpu: 0.0.40
codegen_flags: <defaults>
</compile_context>

<pallas_src>
import functools

import jax
import jax.numpy as jnp
from jax import lax
from jax.experimental import pallas as pl
from jax.experimental.pallas import tpu as pltpu


def _round_up(x, m):
    return -(-x // m) * m


def _make_kernel(batch, b_blk, spp, needs_mask):
    """Kernel over grid (P, spp): axis 0 = core-parallel slice, axis 1 = reduction."""

    def kernel(h_ref, l_ref, u_ref, out_ref, acc_ref):
        i = pl.program_id(1)

        @pl.when(i == 0)
        def _init():
            acc_ref[...] = jnp.zeros_like(acc_ref)

        # Each input block is read exactly once per step.
        h = h_ref[...].astype(jnp.float32)
        l = l_ref[...].astype(jnp.float32)
        u = u_ref[...].astype(jnp.float32)

        d_hl = h - l
        d_hu = h - u

        if needs_mask:
            # Ragged last batch block / overrun step: zero out invalid rows.
            # jnp.where (select) is garbage/NaN-safe for the unselected branch.
            g = pl.program_id(0) * spp + i                  # global batch-block idx
            valid = jnp.clip(batch - g * b_blk, 0, b_blk)
            row = lax.broadcasted_iota(jnp.int32, (b_blk, 1, 1), 0)
            m = row < valid
            d_hl = jnp.where(m, d_hl, 0.0)
            d_hu = jnp.where(m, d_hu, 0.0)

        d_lu = d_hu - d_hl                                  # == l - u (0 on masked rows)

        # Reduce only over the leading (batch-block) axis: pure cross-vreg VPU
        # adds into the resident accumulator; no per-step cross-lane XLU work.
        acc_ref[0] += jnp.sum(jnp.abs(d_hl), axis=0)
        acc_ref[1] += jnp.sum(jnp.abs(d_hu), axis=0)
        acc_ref[2] += jnp.sum(jnp.abs(d_lu), axis=0)

        @pl.when(i == spp - 1)
        def _finalize():
            # Single cross-lane/sublane reduction per pair, once per core slice.
            out_ref[0, 0] = jnp.full((8, 128), jnp.sum(acc_ref[0]), jnp.float32)
            out_ref[0, 1] = jnp.full((8, 128), jnp.sum(acc_ref[1]), jnp.float32)
            out_ref[0, 2] = jnp.full((8, 128), jnp.sum(acc_ref[2]), jnp.float32)

    return kernel


def _pairwise_l1_sums(h, l, u, *, target_block_bytes=None):
    """Returns (3,) f32 array: [sum|h-l|, sum|h-u|, sum|l-u|]."""
    assert h.shape == l.shape == u.shape, "attention maps must share a shape"

    # Collapse extra leading dims (free reshape); keep (ROI, ROI) intact so no
    # padded/sliced copy of the inputs is ever materialized in HBM.
    def canon(x):
        return x if x.ndim == 3 else x.reshape((-1,) + x.shape[-2:])

    h, l, u = canon(h), canon(l), canon(u)
    B, R0, R1 = h.shape
    total = h.size
    itemsize = jnp.dtype(h.dtype).itemsize

    # Generation-aware sizing: VMEM capacity is 128 MiB on v5e/v6e, 64 MiB on v7x.
    try:
        vmem_cap = int(pltpu.get_tpu_info().vmem_capacity_bytes)
    except Exception:  # pragma: no cover - conservative fallback (v7x-sized)
        vmem_cap = 64 << 20
    if target_block_bytes is None:
        target_block_bytes = max(512 << 10, min(8 << 20, vmem_cap // 16))

    # VMEM footprint estimates use (8, 128)-tile padded sizes.
    per_sample_in = _round_up(R0, 8) * _round_up(R1, 128) * itemsize
    acc_bytes = 3 * _round_up(R0, 8) * _round_up(R1, 128) * 4
    out_blk_bytes = 3 * 8 * 128 * 4

    b_blk = max(1, min(B, target_block_bytes // per_sample_in))

    def vmem_need(bb):
        # 3 inputs x 2 pipeline buffers + 2 output buffers + accumulator scratch.
        return 3 * 2 * bb * per_sample_in + 2 * out_blk_bytes + acc_bytes

    while b_blk > 1 and vmem_need(b_blk) > (vmem_cap * 3) // 4:
        b_blk //= 2
    # TODO(synk): for absurdly large ROI (one (ROI, ROI) plane alone > ~3/4 of
    # VMEM) a second-level split of the plane would be required.

    nb = pl.cdiv(B, b_blk)               # number of batch blocks
    P = 2 if nb >= 2 else 1              # leading "parallel" axis (2 TCs on v7x)
    spp = pl.cdiv(nb, P)                 # reduction steps per parallel slice
    needs_mask = (B % b_blk != 0) or (P * spp != nb)

    vmem_limit = int(min(max(vmem_need(b_blk) + (8 << 20), 32 << 20),
                         (vmem_cap * 9) // 10))

    in_spec = pl.BlockSpec(
        (b_blk, R0, R1),
        lambda p, i: (jnp.minimum(p * spp + i, nb - 1), 0, 0))
    out_spec = pl.BlockSpec((1, 3, 8, 128), lambda p, i: (p, 0, 0, 0))

    partials = pl.pallas_call(
        _make_kernel(B, b_blk, spp, needs_mask),
        out_shape=jax.ShapeDtypeStruct((P, 3, 8, 128), jnp.float32),
        grid_spec=pltpu.PrefetchScalarGridSpec(
            num_scalar_prefetch=0,
            grid=(P, spp),
            in_specs=[in_spec, in_spec, in_spec],
            out_specs=out_spec,
            scratch_shapes=[pltpu.VMEM((3, R0, R1), jnp.float32)],
        ),
        compiler_params=pltpu.CompilerParams(
            dimension_semantics=("parallel", "arbitrary"),
            vmem_limit_bytes=vmem_limit,
        ),
        cost_estimate=pl.CostEstimate(
            flops=9 * total,
            transcendentals=0,
            bytes_accessed=3 * total * itemsize + P * 3 * 8 * 128 * 4,
        ),
    )(h, l, u)

    # (P, 3) per-core partial sums -> combine (tiny) in plain JAX.
    return jnp.sum(partials[:, :, 0, 0], axis=0)


@functools.partial(jax.jit,
                   static_argnames=("spat_diff_loss_type", "target_block_bytes"))
def spatial_difference_loss(h, l, u, spat_diff_loss_type="minus_log",
                            target_block_bytes=None):
    """Three-channel ('three_channels') Spatial_Difference_Loss forward.

    Matches the PyTorch module with fmri_dividing_type='three_channels':
      L1(a, b) = mean(|a - b|)
      minus_log : -log(L1(h,l) + L1(h,u) + L1(l,u)),  etc.
    """
    n_elem = float(h.size)  # nn.L1Loss mean denominator (exact at trace time)
    sums = _pairwise_l1_sums(h, l, u, target_block_bytes=target_block_bytes)
    l1_hl = sums[0] / n_elem
    l1_hu = sums[1] / n_elem
    l1_lu = sums[2] / n_elem
    total = l1_hl + l1_hu + l1_lu

    if spat_diff_loss_type == "minus_log":
        return -jnp.log(total)
    elif spat_diff_loss_type == "reciprocal_log":
        return 1.0 / jnp.log(total)
    elif spat_diff_loss_type == "exp_minus":
        return jnp.exp(-l1_hl) + jnp.exp(-l1_hu) + jnp.exp(-l1_lu)
    elif spat_diff_loss_type == "log_loss":
        return (jnp.log(l1_hl) + jnp.log(l1_hu) + jnp.log(l1_lu)) / 3.0
    elif spat_diff_loss_type == "exp_whole":
        return jnp.exp(-total)
    else:
        raise ValueError(f"unknown spat_diff_loss_type: {spat_diff_loss_type}")
    # TODO(synk): 'two_channels'/'four_channels'/'five_channels' variants only
    # change which pairs are summed; they reuse the same kernel pattern with
    # more inputs and are omitted here.


if __name__ == "__main__":
    def l1(a, b):
        return jnp.mean(jnp.abs(a - b))

    # Test 1: single block, single core slice (auto block sizing).
    kh, kl, ku = jax.random.split(jax.random.PRNGKey(0), 3)
    B, R = 2, 32
    h = jax.random.uniform(kh, (B, R, R), dtype=jnp.float32)
    l = jax.random.uniform(kl, (B, R, R), dtype=jnp.float32)
    u = jax.random.uniform(ku, (B, R, R), dtype=jnp.float32)
    loss = jax.block_until_ready(spatial_difference_loss(h, l, u, "minus_log"))
    ref = -jnp.log(l1(h, l) + l1(h, u) + l1(l, u))
    assert jnp.allclose(loss, ref, rtol=1e-5, atol=1e-6), (loss, ref)

    # Test 2: forced tiny blocks -> b_blk=1, nb=5, P=2, spp=3: exercises the
    # parallel axis, the ragged/overrun masking, and the index clamp.
    kh2, kl2, ku2 = jax.random.split(jax.random.PRNGKey(1), 3)
    B2, R2 = 5, 24
    h2 = jax.random.uniform(kh2, (B2, R2, R2), dtype=jnp.float32)
    l2 = jax.random.uniform(kl2, (B2, R2, R2), dtype=jnp.float32)
    u2 = jax.random.uniform(ku2, (B2, R2, R2), dtype=jnp.float32)
    tiny_block = _round_up(R2, 8) * _round_up(R2, 128) * 4   # => b_blk == 1
    loss2 = jax.block_until_ready(
        spatial_difference_loss(h2, l2, u2, "exp_whole",
                                target_block_bytes=tiny_block))
    ref2 = jnp.exp(-(l1(h2, l2) + l1(h2, u2) + l1(l2, u2)))
    assert jnp.allclose(loss2, ref2, rtol=1e-5, atol=1e-6), (loss2, ref2)

    # Test 3: both parallel slices active, no masking (nb=2, P=2, spp=1).
    kh3, kl3, ku3 = jax.random.split(jax.random.PRNGKey(2), 3)
    B3, R3 = 4, 16
    h3 = jax.random.uniform(kh3, (B3, R3, R3), dtype=jnp.float32)
    l3 = jax.random.uniform(kl3, (B3, R3, R3), dtype=jnp.float32)
    u3 = jax.random.uniform(ku3, (B3, R3, R3), dtype=jnp.float32)
    blk3 = 2 * _round_up(R3, 8) * _round_up(R3, 128) * 4     # => b_blk == 2
    loss3 = jax.block_until_ready(
        spatial_difference_loss(h3, l3, u3, "log_loss",
                                target_block_bytes=blk3))
    ref3 = (jnp.log(l1(h3, l3)) + jnp.log(l1(h3, u3)) + jnp.log(l1(l3, u3))) / 3.0
    assert jnp.allclose(loss3, ref3, rtol=1e-5, atol=1e-6), (loss3, ref3)

    print("KERNEL_OK")
</pallas_src>

<mosaic_0001>
module attributes {stable_mosaic.version = 11 : i64} {
  func.func @kernel(%arg0: i32, %arg1: i32, %arg2: memref<2x32x32xf32, #tpu.memory_space<vmem>>, %arg3: memref<2x32x32xf32, #tpu.memory_space<vmem>>, %arg4: memref<2x32x32xf32, #tpu.memory_space<vmem>>, %arg5: memref<1x3x8x128xf32, #tpu.memory_space<vmem>>, %arg6: memref<3x32x32xf32, #tpu.memory_space<vmem>>) attributes {dimension_semantics = [#tpu.dimension_semantics<parallel>, #tpu.dimension_semantics<arbitrary>], iteration_bounds = array<i64: 1, 1>, scalar_prefetch = 0 : i64, scratch_operands = 1 : i64, tpu.core_type = #tpu.core_type<tc>, window_params = [{transform_indices = @transform_0, window_bounds = array<i64: 2, 32, 32>}, {transform_indices = @transform_1, window_bounds = array<i64: 2, 32, 32>}, {transform_indices = @transform_2, window_bounds = array<i64: 2, 32, 32>}, {transform_indices = @transform_3, window_bounds = array<i64: 1, 3, 8, 128>}]} {
    %c0_i32 = arith.constant 0 : i32
    %0 = arith.cmpi eq, %arg1, %c0_i32 : i32
    %1 = arith.extui %0 : i1 to i32
    %c0_i32_0 = arith.constant 0 : i32
    %2 = arith.cmpi ne, %1, %c0_i32_0 : i32
    scf.if %2 {
      %cst_29 = arith.constant 0.000000e+00 : f32
      %36 = vector.broadcast %cst_29 : f32 to vector<3x32x32xf32>
      %c0_30 = arith.constant 0 : index
      %c0_31 = arith.constant 0 : index
      %c0_32 = arith.constant 0 : index
      %37 = vector.load %arg6[%c0_30, %c0_31, %c0_32] : memref<3x32x32xf32, #tpu.memory_space<vmem>>, vector<3x32x32xf32>
      tpu.vector_store %arg6[%c0_30, %c0_31, %c0_32], %36 {strides = array<i32>} : memref<3x32x32xf32, #tpu.memory_space<vmem>>, vector<3x32x32xf32>,
    } else {
    }
    %c0 = arith.constant 0 : index
    %c0_1 = arith.constant 0 : index
    %c0_2 = arith.constant 0 : index
    %3 = vector.load %arg2[%c0, %c0_1, %c0_2] : memref<2x32x32xf32, #tpu.memory_space<vmem>>, vector<2x32x32xf32>
    %c0_3 = arith.constant 0 : index
    %c0_4 = arith.constant 0 : index
    %c0_5 = arith.constant 0 : index
    %4 = vector.load %arg3[%c0_3, %c0_4, %c0_5] : memref<2x32x32xf32, #tpu.memory_space<vmem>>, vector<2x32x32xf32>
    %c0_6 = arith.constant 0 : index
    %c0_7 = arith.constant 0 : index
    %c0_8 = arith.constant 0 : index
    %5 = vector.load %arg4[%c0_6, %c0_7, %c0_8] : memref<2x32x32xf32, #tpu.memory_space<vmem>>, vector<2x32x32xf32>
    %6 = arith.subf %3, %4 : vector<2x32x32xf32>
    %7 = arith.subf %3, %5 : vector<2x32x32xf32>
    %8 = arith.subf %7, %6 : vector<2x32x32xf32>
    %c0_9 = arith.constant 0 : index
    %c0_10 = arith.constant 0 : index
    %c0_11 = arith.constant 0 : index
    %9 = vector.load %arg6[%c0_9, %c0_10, %c0_11] : memref<3x32x32xf32, #tpu.memory_space<vmem>>, vector<1x32x32xf32>
    %10 = vector.shape_cast %9 : vector<1x32x32xf32> to vector<32x32xf32>
    %11 = math.absf %6 : vector<2x32x32xf32>
    %cst = arith.constant dense<0.000000e+00> : vector<32x32xf32>
    %12 = vector.multi_reduction <add>, %11, %cst [0] : vector<2x32x32xf32> to vector<32x32xf32>
    %13 = arith.addf %10, %12 : vector<32x32xf32>
    %c0_12 = arith.constant 0 : index
    %c0_13 = arith.constant 0 : index
    %c0_14 = arith.constant 0 : index
    %14 = vector.load %arg6[%c0_12, %c0_13, %c0_14] : memref<3x32x32xf32, #tpu.memory_space<vmem>>, vector<1x32x32xf32>
    %15 = vector.shape_cast %14 : vector<1x32x32xf32> to vector<32x32xf32>
    %16 = vector.shape_cast %13 : vector<32x32xf32> to vector<1x32x32xf32>
    tpu.vector_store %arg6[%c0_12, %c0_13, %c0_14], %16 {strides = array<i32>} : memref<3x32x32xf32, #tpu.memory_space<vmem>>, vector<1x32x32xf32>,
    %c1 = arith.constant 1 : index
    %c0_15 = arith.constant 0 : index
    %c0_16 = arith.constant 0 : index
    %17 = vector.load %arg6[%c1, %c0_15, %c0_16] : memref<3x32x32xf32, #tpu.memory_space<vmem>>, vector<1x32x32xf32>
    %18 = vector.shape_cast %17 : vector<1x32x32xf32> to vector<32x32xf32>
    %19 = math.absf %7 : vector<2x32x32xf32>
    %cst_17 = arith.constant dense<0.000000e+00> : vector<32x32xf32>
    %20 = vector.multi_reduction <add>, %19, %cst_17 [0] : vector<2x32x32xf32> to vector<32x32xf32>
    %21 = arith.addf %18, %20 : vector<32x32xf32>
    %c1_18 = arith.constant 1 : index
    %c0_19 = arith.constant 0 : index
    %c0_20 = arith.constant 0 : index
    %22 = vector.load %arg6[%c1_18, %c0_19, %c0_20] : memref<3x32x32xf32, #tpu.memory_space<vmem>>, vector<1x32x32xf32>
    %23 = vector.shape_cast %22 : vector<1x32x32xf32> to vector<32x32xf32>
    %24 = vector.shape_cast %21 : vector<32x32xf32> to vector<1x32x32xf32>
    tpu.vector_store %arg6[%c1_18, %c0_19, %c0_20], %24 {strides = array<i32>} : memref<3x32x32xf32, #tpu.memory_space<vmem>>, vector<1x32x32xf32>,
    %c2 = arith.constant 2 : index
    %c0_21 = arith.constant 0 : index
    %c0_22 = arith.constant 0 : index
    %25 = vector.load %arg6[%c2, %c0_21, %c0_22] : memref<3x32x32xf32, #tpu.memory_space<vmem>>, vector<1x32x32xf32>
    %26 = vector.shape_cast %25 : vector<1x32x32xf32> to vector<32x32xf32>
    %27 = math.absf %8 : vector<2x32x32xf32>
    %cst_23 = arith.constant dense<0.000000e+00> : vector<32x32xf32>
    %28 = vector.multi_reduction <add>, %27, %cst_23 [0] : vector<2x32x32xf32> to vector<32x32xf32>
    %29 = arith.addf %26, %28 : vector<32x32xf32>
    %c2_24 = arith.constant 2 : index
    %c0_25 = arith.constant 0 : index
    %c0_26 = arith.constant 0 : index
    %30 = vector.load %arg6[%c2_24, %c0_25, %c0_26] : memref<3x32x32xf32, #tpu.memory_space<vmem>>, vector<1x32x32xf32>
    %31 = vector.shape_cast %30 : vector<1x32x32xf32> to vector<32x32xf32>
    %32 = vector.shape_cast %29 : vector<32x32xf32> to vector<1x32x32xf32>
    tpu.vector_store %arg6[%c2_24, %c0_25, %c0_26], %32 {strides = array<i32>} : memref<3x32x32xf32, #tpu.memory_space<vmem>>, vector<1x32x32xf32>,
    %c0_i32_27 = arith.constant 0 : i32
    %33 = arith.cmpi eq, %arg1, %c0_i32_27 : i32
    %34 = arith.extui %33 : i1 to i32
    %c0_i32_28 = arith.constant 0 : i32
    %35 = arith.cmpi ne, %34, %c0_i32_28 : i32
    scf.if %35 {
      %c0_29 = arith.constant 0 : index
      %c0_30 = arith.constant 0 : index
      %c0_31 = arith.constant 0 : index
      %36 = vector.load %arg6[%c0_29, %c0_30, %c0_31] : memref<3x32x32xf32, #tpu.memory_space<vmem>>, vector<1x32x32xf32>
      %37 = vector.shape_cast %36 : vector<1x32x32xf32> to vector<32x32xf32>
      %38 = vector.shape_cast %37 : vector<32x32xf32> to vector<1x32x32xf32>
      %cst_32 = arith.constant dense<0.000000e+00> : vector<1xf32>
      %39 = vector.multi_reduction <add>, %38, %cst_32 [1, 2] : vector<1x32x32xf32> to vector<1xf32>
      %40 = vector.shape_cast %39 : vector<1xf32> to vector<1x1x1xf32>
      %41 = vector.extract %40[0, 0, 0] : f32 from vector<1x1x1xf32>
      %42 = vector.broadcast %41 : f32 to vector<8x128xf32>
      %c0_33 = arith.constant 0 : index
      %c0_34 = arith.constant 0 : index
      %c0_35 = arith.constant 0 : index
      %c0_36 = arith.constant 0 : index
      %43 = vector.load %arg5[%c0_33, %c0_34, %c0_35, %c0_36] : memref<1x3x8x128xf32, #tpu.memory_space<vmem>>, vector<1x1x8x128xf32>
      %44 = vector.shape_cast %43 : vector<1x1x8x128xf32> to vector<8x128xf32>
      %45 = vector.shape_cast %42 : vector<8x128xf32> to vector<1x1x8x128xf32>
      tpu.vector_store %arg5[%c0_33, %c0_34, %c0_35, %c0_36], %45 {strides = array<i32>} : memref<1x3x8x128xf32, #tpu.memory_space<vmem>>, vector<1x1x8x128xf32>,
      %c1_37 = arith.constant 1 : index
      %c0_38 = arith.constant 0 : index
      %c0_39 = arith.constant 0 : index
      %46 = vector.load %arg6[%c1_37, %c0_38, %c0_39] : memref<3x32x32xf32, #tpu.memory_space<vmem>>, vector<1x32x32xf32>
      %47 = vector.shape_cast %46 : vector<1x32x32xf32> to vector<32x32xf32>
      %48 = vector.shape_cast %47 : vector<32x32xf32> to vector<1x32x32xf32>
      %cst_40 = arith.constant dense<0.000000e+00> : vector<1xf32>
      %49 = vector.multi_reduction <add>, %48, %cst_40 [1, 2] : vector<1x32x32xf32> to vector<1xf32>
      %50 = vector.shape_cast %49 : vector<1xf32> to vector<1x1x1xf32>
      %51 = vector.extract %50[0, 0, 0] : f32 from vector<1x1x1xf32>
      %52 = vector.broadcast %51 : f32 to vector<8x128xf32>
      %c0_41 = arith.constant 0 : index
      %c1_42 = arith.constant 1 : index
      %c0_43 = arith.constant 0 : index
      %c0_44 = arith.constant 0 : index
      %53 = vector.load %arg5[%c0_41, %c1_42, %c0_43, %c0_44] : memref<1x3x8x128xf32, #tpu.memory_space<vmem>>, vector<1x1x8x128xf32>
      %54 = vector.shape_cast %53 : vector<1x1x8x128xf32> to vector<8x128xf32>
      %55 = vector.shape_cast %52 : vector<8x128xf32> to vector<1x1x8x128xf32>
      tpu.vector_store %arg5[%c0_41, %c1_42, %c0_43, %c0_44], %55 {strides = array<i32>} : memref<1x3x8x128xf32, #tpu.memory_space<vmem>>, vector<1x1x8x128xf32>,
      %c2_45 = arith.constant 2 : index
      %c0_46 = arith.constant 0 : index
      %c0_47 = arith.constant 0 : index
      %56 = vector.load %arg6[%c2_45, %c0_46, %c0_47] : memref<3x32x32xf32, #tpu.memory_space<vmem>>, vector<1x32x32xf32>
      %57 = vector.shape_cast %56 : vector<1x32x32xf32> to vector<32x32xf32>
      %58 = vector.shape_cast %57 : vector<32x32xf32> to vector<1x32x32xf32>
      %cst_48 = arith.constant dense<0.000000e+00> : vector<1xf32>
      %59 = vector.multi_reduction <add>, %58, %cst_48 [1, 2] : vector<1x32x32xf32> to vector<1xf32>
      %60 = vector.shape_cast %59 : vector<1xf32> to vector<1x1x1xf32>
      %61 = vector.extract %60[0, 0, 0] : f32 from vector<1x1x1xf32>
      %62 = vector.broadcast %61 : f32 to vector<8x128xf32>
      %c0_49 = arith.constant 0 : index
      %c2_50 = arith.constant 2 : index
      %c0_51 = arith.constant 0 : index
      %c0_52 = arith.constant 0 : index
      %63 = vector.load %arg5[%c0_49, %c2_50, %c0_51, %c0_52] : memref<1x3x8x128xf32, #tpu.memory_space<vmem>>, vector<1x1x8x128xf32>
      %64 = vector.shape_cast %63 : vector<1x1x8x128xf32> to vector<8x128xf32>
      %65 = vector.shape_cast %62 : vector<8x128xf32> to vector<1x1x8x128xf32>
      tpu.vector_store %arg5[%c0_49, %c2_50, %c0_51, %c0_52], %65 {strides = array<i32>} : memref<1x3x8x128xf32, #tpu.memory_space<vmem>>, vector<1x1x8x128xf32>,
    } else {
    }
    return
  }
  func.func @transform_0(%arg0: i32, %arg1: i32) -> (i32, i32, i32) {
    %c1_i32 = arith.constant 1 : i32
    %0 = arith.muli %arg0, %c1_i32 : i32
    %1 = arith.addi %0, %arg1 : i32
    %c0_i32 = arith.constant 0 : i32
    %2 = arith.minsi %1, %c0_i32 : i32
    %c0_i32_0 = arith.constant 0 : i32
    %c0_i32_1 = arith.constant 0 : i32
    %c0_i32_2 = arith.constant 0 : i32
    return %2, %c0_i32_0, %c0_i32_1 : i32, i32, i32
  }
  func.func @transform_1(%arg0: i32, %arg1: i32) -> (i32, i32, i32) {
    %c1_i32 = arith.constant 1 : i32
    %0 = arith.muli %arg0, %c1_i32 : i32
    %1 = arith.addi %0, %arg1 : i32
    %c0_i32 = arith.constant 0 : i32
    %2 = arith.minsi %1, %c0_i32 : i32
    %c0_i32_0 = arith.constant 0 : i32
    %c0_i32_1 = arith.constant 0 : i32
    %c0_i32_2 = arith.constant 0 : i32
    return %2, %c0_i32_0, %c0_i32_1 : i32, i32, i32
  }
  func.func @transform_2(%arg0: i32, %arg1: i32) -> (i32, i32, i32) {
    %c1_i32 = arith.constant 1 : i32
    %0 = arith.muli %arg0, %c1_i32 : i32
    %1 = arith.addi %0, %arg1 : i32
    %c0_i32 = arith.constant 0 : i32
    %2 = arith.minsi %1, %c0_i32 : i32
    %c0_i32_0 = arith.constant 0 : i32
    %c0_i32_1 = arith.constant 0 : i32
    %c0_i32_2 = arith.constant 0 : i32
    return %2, %c0_i32_0, %c0_i32_1 : i32, i32, i32
  }
  func.func @transform_3(%arg0: i32, %arg1: i32) -> (i32, i32, i32, i32) {
    %c0_i32 = arith.constant 0 : i32
    %c0_i32_0 = arith.constant 0 : i32
    %c0_i32_1 = arith.constant 0 : i32
    %c0_i32_2 = arith.constant 0 : i32
    return %arg0, %c0_i32, %c0_i32_0, %c0_i32_1 : i32, i32, i32, i32
  }
}

</mosaic_0001>

<llo_original>
// kernel: spatial_difference_loss.1
$region0: #{spatial_difference_loss.1}
  #allocation0 [shape = 'u32[]', space=smem, size = 0x4, offset = 0x4, fixed_abs, tag = 'smem constant byte address 0x4 - core index']
  #allocation1 [shape = 'u32[144,128]{1,0:T(1,128)}', space=vmem, size = 0x12000, scoped, tag = 'internal scratch']
  #allocation2 [shape = 'f32[3,32,32]{2,1,0:T(8,128)}', space=vmem, size = 0xc000, scoped, tag = 'scratch operand']
  %s0 = inlined_call_operand.hbm [shape: f32[2,32,32], index: 0, kind: input, shape index: {}]
  %s1 = inlined_call_operand.hbm [shape: f32[2,32,32], index: 1, kind: input, shape index: {}]
  %s2 = inlined_call_operand.hbm [shape: f32[2,32,32], index: 2, kind: input, shape index: {}]
  %s3 = inlined_call_operand.vmem [shape: f32[1,3,8,128], index: 3, kind: output, shape index: {}]
  %s4 = sld [smem:[#allocation0]]
  $region42: #{spatial_difference_loss.1} parent=0
    _
  %s6 = ssub.s32 1, %s4
  %s7 = scalar_select 0, %s6, %s4
  $region1: #{spatial_difference_loss.1} parent=0
    #allocation3 [shape = 'u8[32768]{0}', space=vmem, size = 0x8000, scoped, tag = 'input window, operand 0, single buffered']
    #allocation4 [shape = 's32[1]{0}', space=sflag, size = 0x4, scoped, tag = 'scoped memory for spatial_difference_loss.1']
    #allocation5 [shape = 'u8[32768]{0}', space=vmem, size = 0x8000, scoped, tag = 'input window, operand 1, single buffered']
    #allocation6 [shape = 's32[1]{0}', space=sflag, size = 0x4, scoped, tag = 'scoped memory for spatial_difference_loss.1']
    #allocation7 [shape = 'u8[32768]{0}', space=vmem, size = 0x8000, scoped, tag = 'input window, operand 2, single buffered']
    %8 = vsyncpa [#allocation4], 0
    %9 = vsyncpa [#allocation6], 0
    // Predicated region
    $region2: #{spatial_difference_loss.1} parent=1 // pred_check
      _
    $region3: #{spatial_difference_loss.1} parent=1 // pred_check_branch
      %11 = sbr.rel (0) target = $region5
    $region4: #{spatial_difference_loss.1} parent=1 // pred_region
      %s12 = sadd.s32 0, 0
      %p13 = scmp.lt.s32.totalorder %s12, 0
      %s14 = scalar_select %p13, %s12, 0
      %s15 = smul.u32 2, %s14
      %s17 = ssub.s32 1024, 1024
      %18 = vsyncadd [#allocation4], %s17
      %s19 = smul.addr %s15, 4
      %s20 = smul.addr %s19, 128
      %s21 = scalar_lea.hbm %s0, %s20
      %s22 = sshll.u32 [#allocation3], 4
      %s23 = int_to_ptr.vmem [resolvable:$true] %s22
      %28 = dma.hbm_to_vmem [thread:$0]  %s21, 1024, %s23, [#allocation4], 128, 128, 8
    $region5: #{spatial_difference_loss.1} parent=1 // pred_fallthru
      _
    // Predicated region
    $region6: #{spatial_difference_loss.1} parent=1 // pred_check
      _
    $region7: #{spatial_difference_loss.1} parent=1 // pred_check_branch
      %30 = sbr.rel (0) target = $region9
    $region8: #{spatial_difference_loss.1} parent=1 // pred_region
      %s31 = sadd.s32 0, 0
      %p32 = scmp.lt.s32.totalorder %s31, 0
      %s33 = scalar_select %p32, %s31, 0
      %s34 = smul.u32 2, %s33
      %s36 = ssub.s32 1024, 1024
      %37 = vsyncadd [#allocation6], %s36
      %s38 = smul.addr %s34, 4
      %s39 = smul.addr %s38, 128
      %s40 = scalar_lea.hbm %s1, %s39
      %s41 = sshll.u32 [#allocation5], 4
      %s42 = int_to_ptr.vmem [resolvable:$true] %s41
      %47 = dma.hbm_to_vmem [thread:$0]  %s40, 1024, %s42, [#allocation6], 128, 128, 8
    $region9: #{spatial_difference_loss.1} parent=1 // pred_fallthru
      _
    // Predicated region
    $region10: #{spatial_difference_loss.1} parent=1 // pred_check
      _
    $region11: #{spatial_difference_loss.1} parent=1 // pred_check_branch
      %49 = sbr.rel (0) target = $region13
    $region12: #{spatial_difference_loss.1} parent=1 // pred_region
      %s50 = sadd.s32 0, 0
      %p51 = scmp.lt.s32.totalorder %s50, 0
      %s52 = scalar_select %p51, %s50, 0
      %s53 = smul.u32 2, %s52
      %s55 = ssub.s32 1024, 1024
      %56 = vsyncadd [#allocation6], %s55
      %s57 = smul.addr %s53, 4
      %s58 = smul.addr %s57, 128
      %s59 = scalar_lea.hbm %s2, %s58
      %s60 = sshll.u32 [#allocation7], 4
      %s61 = int_to_ptr.vmem [resolvable:$true] %s60
      %66 = dma.hbm_to_vmem [thread:$0]  %s59, 1024, %s61, [#allocation6], 128, 128, 8
    $region13: #{spatial_difference_loss.1} parent=1 // pred_fallthru
      _
    // Predicated region
    $region14: #{spatial_difference_loss.1} parent=1 // pred_check
      _
    $region15: #{spatial_difference_loss.1} parent=1 // pred_check_branch
      %68 = sbr.rel (0) target = $region17
    $region16: #{spatial_difference_loss.1} parent=1 // pred_region
      %69 = dma.done [#allocation4], 1024
    $region17: #{spatial_difference_loss.1} parent=1 // pred_fallthru
      _
    // Predicated region
    $region18: #{spatial_difference_loss.1} parent=1 // pred_check
      _
    $region19: #{spatial_difference_loss.1} parent=1 // pred_check_branch
      %71 = sbr.rel (0) target = $region21
    $region20: #{spatial_difference_loss.1} parent=1 // pred_region
      %72 = dma.done [#allocation6], 1024
    $region21: #{spatial_difference_loss.1} parent=1 // pred_fallthru
      _
    // Predicated region
    $region22: #{spatial_difference_loss.1} parent=1 // pred_check
      _
    $region23: #{spatial_difference_loss.1} parent=1 // pred_check_branch
      %74 = sbr.rel (0) target = $region25
    $region24: #{spatial_difference_loss.1} parent=1 // pred_region
      %75 = dma.done [#allocation6], 1024
    $region25: #{spatial_difference_loss.1} parent=1 // pred_fallthru
      _
    %s76 = sadd.s32 0, 0
    %p77 = scmp.lt.s32.totalorder %s76, 0
    %s78 = scalar_select %p77, %s76, 0
    %s79 = smul.u32 2, %s78
    %s80 = sadd.s32 0, 0
    %p81 = scmp.lt.s32.totalorder %s80, 0
    %s82 = scalar_select %p81, %s80, 0
    %s83 = smul.u32 2, %s82
    %s84 = sadd.s32 0, 0
    %p85 = scmp.lt.s32.totalorder %s84, 0
    %s86 = scalar_select %p85, %s84, 0
    %s87 = smul.u32 2, %s86
    %p88 = scmp.eq.s32.totalorder 0, 0
    // Predicated region
    $region26: #{spatial_difference_loss.1} parent=1 // pred_check
      %p89 = pneg %p88
    $region27: #{spatial_difference_loss.1} parent=1 // pred_check_branch
      %91 = sbr.rel (%p89) target = $region29
    $region28: #{spatial_difference_loss.1} parent=1 // pred_region
      %vm92 = vcmask 261120
      %93 = vst.msk [vmem:[#allocation2] sm:$0xff] %vm92, 0.0
      %94 = vst.msk [vmem:[#allocation2 + $0x8] sm:$0xff] %vm92, 0.0
      %95 = vst.msk [vmem:[#allocation2 + $0x10] sm:$0xff] %vm92, 0.0
      %96 = vst.msk [vmem:[#allocation2 + $0x18] sm:$0xff] %vm92, 0.0
      %97 = vst.msk [vmem:[#allocation2 + $0x20] sm:$0xff] %vm92, 0.0
      %98 = vst.msk [vmem:[#allocation2 + $0x28] sm:$0xff] %vm92, 0.0
      %99 = vst.msk [vmem:[#allocation2 + $0x30] sm:$0xff] %vm92, 0.0
      %100 = vst.msk [vmem:[#allocation2 + $0x38] sm:$0xff] %vm92, 0.0
      %101 = vst.msk [vmem:[#allocation2 + $0x40] sm:$0xff] %vm92, 0.0
      %102 = vst.msk [vmem:[#allocation2 + $0x48] sm:$0xff] %vm92, 0.0
      %103 = vst.msk [vmem:[#allocation2 + $0x50] sm:$0xff] %vm92, 0.0
      %104 = vst.msk [vmem:[#allocation2 + $0x58] sm:$0xff] %vm92, 0.0
    $region29: #{spatial_difference_loss.1} parent=1 // pred_fallthru
      _
    %v105 = vld [vmem:[#allocation3] sm:$0xff]
    %v106 = vld [vmem:[#allocation3 + $0x8] sm:$0xff]
    %v107 = vld [vmem:[#allocation3 + $0x10] sm:$0xff]
    %v108 = vld [vmem:[#allocation3 + $0x18] sm:$0xff]
    %v109 = vld [vmem:[#allocation3 + $0x20] sm:$0xff]
    %v110 = vld [vmem:[#allocation3 + $0x28] sm:$0xff]
    %v111 = vld [vmem:[#allocation3 + $0x30] sm:$0xff]
    %v112 = vld [vmem:[#allocation3 + $0x38] sm:$0xff]
    %v113 = vld [vmem:[#allocation5] sm:$0xff]
    %v114 = vld [vmem:[#allocation5 + $0x8] sm:$0xff]
    %v115 = vld [vmem:[#allocation5 + $0x10] sm:$0xff]
    %v116 = vld [vmem:[#allocation5 + $0x18] sm:$0xff]
    %v117 = vld [vmem:[#allocation5 + $0x20] sm:$0xff]
    %v118 = vld [vmem:[#allocation5 + $0x28] sm:$0xff]
    %v119 = vld [vmem:[#allocation5 + $0x30] sm:$0xff]
    %v120 = vld [vmem:[#allocation5 + $0x38] sm:$0xff]
    %v121 = vld [vmem:[#allocation7] sm:$0xff]
    %v122 = vld [vmem:[#allocation7 + $0x8] sm:$0xff]
    %v123 = vld [vmem:[#allocation7 + $0x10] sm:$0xff]
    %v124 = vld [vmem:[#allocation7 + $0x18] sm:$0xff]
    %v125 = vld [vmem:[#allocation7 + $0x20] sm:$0xff]
    %v126 = vld [vmem:[#allocation7 + $0x28] sm:$0xff]
    %v127 = vld [vmem:[#allocation7 + $0x30] sm:$0xff]
    %v128 = vld [vmem:[#allocation7 + $0x38] sm:$0xff]
    %v129 = vsub.f32 %v105, %v113
    %v130 = vsub.f32 %v106, %v114
    %v131 = vsub.f32 %v107, %v115
    %v132 = vsub.f32 %v108, %v116
    %v133 = vsub.f32 %v109, %v117
    %v134 = vsub.f32 %v110, %v118
    %v135 = vsub.f32 %v111, %v119
    %v136 = vsub.f32 %v112, %v120
    %v137 = vsub.f32 %v105, %v121
    %v138 = vsub.f32 %v106, %v122
    %v139 = vsub.f32 %v107, %v123
    %v140 = vsub.f32 %v108, %v124
    %v141 = vsub.f32 %v109, %v125
    %v142 = vsub.f32 %v110, %v126
    %v143 = vsub.f32 %v111, %v127
    %v144 = vsub.f32 %v112, %v128
    %v145 = vsub.f32 %v137, %v129
    %v146 = vsub.f32 %v138, %v130
    %v147 = vsub.f32 %v139, %v131
    %v148 = vsub.f32 %v140, %v132
    %v149 = vsub.f32 %v141, %v133
    %v150 = vsub.f32 %v142, %v134
    %v151 = vsub.f32 %v143, %v135
    %v152 = vsub.f32 %v144, %v136
    %v153 = vld [vmem:[#allocation2] sm:$0xff]
    %v154 = vld [vmem:[#allocation2 + $0x8] sm:$0xff]
    %v155 = vld [vmem:[#allocation2 + $0x10] sm:$0xff]
    %v156 = vld [vmem:[#allocation2 + $0x18] sm:$0xff]
    %v157 = vand.u32 2147483647, %v129
    %v158 = vand.u32 2147483647, %v130
    %v159 = vand.u32 2147483647, %v131
    %v160 = vand.u32 2147483647, %v132
    %v161 = vand.u32 2147483647, %v133
    %v162 = vand.u32 2147483647, %v134
    %v163 = vand.u32 2147483647, %v135
    %v164 = vand.u32 2147483647, %v136
    %vm165 = vcmask 261120
    %v166 = vsel %vm165, %v157, 0.0
    %v167 = vsel %vm165, %v161, 0.0
    %v168 = vadd.f32 %v166, %v167
    %v169 = vsel %vm165, %v158, 0.0
    %v170 = vsel %vm165, %v162, 0.0
    %v171 = vadd.f32 %v169, %v170
    %v172 = vsel %vm165, %v159, 0.0
    %v173 = vsel %vm165, %v163, 0.0
    %v174 = vadd.f32 %v172, %v173
    %v175 = vsel %vm165, %v160, 0.0
    %v176 = vsel %vm165, %v164, 0.0
    %v177 = vadd.f32 %v175, %v176
    %v178 = vadd.f32 %v153, %v168
    %v179 = vadd.f32 %v154, %v171
    %v180 = vadd.f32 %v155, %v174
    %v181 = vadd.f32 %v156, %v177
    %182 = vst.msk [vmem:[#allocation2] sm:$0xff] %vm165, %v178
    %183 = vst.msk [vmem:[#allocation2 + $0x8] sm:$0xff] %vm165, %v179
    %184 = vst.msk [vmem:[#allocation2 + $0x10] sm:$0xff] %vm165, %v180
    %185 = vst.msk [vmem:[#allocation2 + $0x18] sm:$0xff] %vm165, %v181
    %s186 = scalar_lea.vmem [#allocation2], 32
    %v187 = vld [vmem:[%s186] sm:$0xff]
    %v188 = vld [vmem:[%s186 + $0x8] sm:$0xff]
    %v189 = vld [vmem:[%s186 + $0x10] sm:$0xff]
    %v190 = vld [vmem:[%s186 + $0x18] sm:$0xff]
    %v191 = vand.u32 2147483647, %v137
    %v192 = vand.u32 2147483647, %v138
    %v193 = vand.u32 2147483647, %v139
    %v194 = vand.u32 2147483647, %v140
    %v195 = vand.u32 2147483647, %v141
    %v196 = vand.u32 2147483647, %v142
    %v197 = vand.u32 2147483647, %v143
    %v198 = vand.u32 2147483647, %v144
    %v199 = vsel %vm165, %v191, 0.0
    %v200 = vsel %vm165, %v195, 0.0
    %v201 = vadd.f32 %v199, %v200
    %v202 = vsel %vm165, %v192, 0.0
    %v203 = vsel %vm165, %v196, 0.0
    %v204 = vadd.f32 %v202, %v203
    %v205 = vsel %vm165, %v193, 0.0
    %v206 = vsel %vm165, %v197, 0.0
    %v207 = vadd.f32 %v205, %v206
    %v208 = vsel %vm165, %v194, 0.0
    %v209 = vsel %vm165, %v198, 0.0
    %v210 = vadd.f32 %v208, %v209
    %v211 = vadd.f32 %v187, %v201
    %v212 = vadd.f32 %v188, %v204
    %v213 = vadd.f32 %v189, %v207
    %v214 = vadd.f32 %v190, %v210
    %215 = vst.msk [vmem:[%s186] sm:$0xff] %vm165, %v211
    %216 = vst.msk [vmem:[%s186 + $0x8] sm:$0xff] %vm165, %v212
    %217 = vst.msk [vmem:[%s186 + $0x10] sm:$0xff] %vm165, %v213
    %218 = vst.msk [vmem:[%s186 + $0x18] sm:$0xff] %vm165, %v214
    %s219 = scalar_lea.vmem [#allocation2], 64
    %v220 = vld [vmem:[%s219] sm:$0xff]
    %v221 = vld [vmem:[%s219 + $0x8] sm:$0xff]
    %v222 = vld [vmem:[%s219 + $0x10] sm:$0xff]
    %v223 = vld [vmem:[%s219 + $0x18] sm:$0xff]
    %v224 = vand.u32 2147483647, %v145
    %v225 = vand.u32 2147483647, %v146
    %v226 = vand.u32 2147483647, %v147
    %v227 = vand.u32 2147483647, %v148
    %v228 = vand.u32 2147483647, %v149
    %v229 = vand.u32 2147483647, %v150
    %v230 = vand.u32 2147483647, %v151
    %v231 = vand.u32 2147483647, %v152
    %v232 = vsel %vm165, %v224, 0.0
    %v233 = vsel %vm165, %v228, 0.0
    %v234 = vadd.f32 %v232, %v233
    %v235 = vsel %vm165, %v225, 0.0
    %v236 = vsel %vm165, %v229, 0.0
    %v237 = vadd.f32 %v235, %v236
    %v238 = vsel %vm165, %v226, 0.0
    %v239 = vsel %vm165, %v230, 0.0
    %v240 = vadd.f32 %v238, %v239
    %v241 = vsel %vm165, %v227, 0.0
    %v242 = vsel %vm165, %v231, 0.0
    %v243 = vadd.f32 %v241, %v242
    %v244 = vadd.f32 %v220, %v234
    %v245 = vadd.f32 %v221, %v237
    %v246 = vadd.f32 %v222, %v240
    %v247 = vadd.f32 %v223, %v243
    %248 = vst.msk [vmem:[%s219] sm:$0xff] %vm165, %v244
    %249 = vst.msk [vmem:[%s219 + $0x8] sm:$0xff] %vm165, %v245
    %250 = vst.msk [vmem:[%s219 + $0x10] sm:$0xff] %vm165, %v246
    %251 = vst.msk [vmem:[%s219 + $0x18] sm:$0xff] %vm165, %v247
    // Predicated region
    $region30: #{spatial_difference_loss.1} parent=1 // pred_check
      %p252 = pneg %p88
    $region31: #{spatial_difference_loss.1} parent=1 // pred_check_branch
      %254 = sbr.rel (%p252) target = $region33
    $region32: #{spatial_difference_loss.1} parent=1 // pred_region
      %v255 = vld [vmem:[#allocation2] sm:$0xff]
      %v256 = vld [vmem:[#allocation2 + $0x8] sm:$0xff]
      %v257 = vld [vmem:[#allocation2 + $0x10] sm:$0xff]
      %v258 = vld [vmem:[#allocation2 + $0x18] sm:$0xff]
      %v259 = vsel %vm165, %v255, 0.0
      %v260 = vsel %vm165, %v256, 0.0
      %v261 = vadd.f32 %v259, %v260
      %v262 = vsel %vm165, %v257, 0.0
      %v263 = vadd.f32 %v261, %v262
      %v264 = vsel %vm165, %v258, 0.0
      %v265 = vadd.f32 %v263, %v264
      %266 = vadd.xlane.f32.xlu0 %v265
      %v267 = vpop.xlane.xlu0 %266
      %v268 = vrot.slane %v267, 4
      %v269 = vadd.f32 %v267, %v268
      %v270 = vrot.slane %v269, 2
      %v271 = vadd.f32 %v269, %v270
      %v272 = vrot.slane %v271, 1
      %v273 = vadd.f32 %v271, %v272
      %s274 = vtos %v273
      %v275 = vstv %s274
      %276 = vst [vmem:[%s3] sm:$0xff] %v275
      %v277 = vld [vmem:[%s186] sm:$0xff]
      %v278 = vld [vmem:[%s186 + $0x8] sm:$0xff]
      %v279 = vld [vmem:[%s186 + $0x10] sm:$0xff]
      %v280 = vld [vmem:[%s186 + $0x18] sm:$0xff]
      %v281 = vsel %vm165, %v277, 0.0
      %v282 = vsel %vm165, %v278, 0.0
      %v283 = vadd.f32 %v281, %v282
      %v284 = vsel %vm165, %v279, 0.0
      %v285 = vadd.f32 %v283, %v284
      %v286 = vsel %vm165, %v280, 0.0
      %v287 = vadd.f32 %v285, %v286
      %288 = vadd.xlane.f32.xlu0 %v287
      %v289 = vpop.xlane.xlu0 %288
      %v290 = vrot.slane %v289, 4
      %v291 = vadd.f32 %v289, %v290
      %v292 = vrot.slane %v291, 2
      %v293 = vadd.f32 %v291, %v292
      %v294 = vrot.slane %v293, 1
      %v295 = vadd.f32 %v293, %v294
      %s296 = vtos %v295
      %v297 = vstv %s296
      %s298 = scalar_lea.vmem %s3, 8
      %299 = vst [vmem:[%s298] sm:$0xff] %v297
      %v300 = vld [vmem:[%s219] sm:$0xff]
      %v301 = vld [vmem:[%s219 + $0x8] sm:$0xff]
      %v302 = vld [vmem:[%s219 + $0x10] sm:$0xff]
      %v303 = vld [vmem:[%s219 + $0x18] sm:$0xff]
      %v304 = vsel %vm165, %v300, 0.0
      %v305 = vsel %vm165, %v301, 0.0
      %v306 = vadd.f32 %v304, %v305
      %v307 = vsel %vm165, %v302, 0.0
      %v308 = vadd.f32 %v306, %v307
      %v309 = vsel %vm165, %v303, 0.0
      %v310 = vadd.f32 %v308, %v309
      %311 = vadd.xlane.f32.xlu0 %v310
      %v312 = vpop.xlane.xlu0 %311
      %v313 = vrot.slane %v312, 4
      %v314 = vadd.f32 %v312, %v313
      %v315 = vrot.slane %v314, 2
      %v316 = vadd.f32 %v314, %v315
      %v317 = vrot.slane %v316, 1
      %v318 = vadd.f32 %v316, %v317
      %s319 = vtos %v318
      %v320 = vstv %s319
      %s321 = scalar_lea.vmem %s3, 16
      %322 = vst [vmem:[%s321] sm:$0xff] %v320
    $region33: #{spatial_difference_loss.1} parent=1 // pred_fallthru
      _
    // Predicated region
    $region34: #{spatial_difference_loss.1} parent=1 // pred_check
      _
    $region35: #{spatial_difference_loss.1} parent=1 // pred_check_branch
      %324 = sbr.rel (0) target = $region37
    $region36: #{spatial_difference_loss.1} parent=1 // pred_region
      _
    $region37: #{spatial_difference_loss.1} parent=1 // pred_fallthru
      _
    // Predicated region
    $region38: #{spatial_difference_loss.1} parent=1 // pred_check
      _
    $region39: #{spatial_difference_loss.1} parent=1 // pred_check_branch
      %326 = sbr.rel (0) target = $region41
    $region40: #{spatial_difference_loss.1} parent=1 // pred_region
      _
    $region41: #{spatial_difference_loss.1} parent=1 // pred_fallthru
      _
    %327 = vsyncpa [#allocation4], 1
    %328 = vsyncpa [#allocation6], 1

</llo_original>
